<compile_context>
chip_gen: v6e
topology: v6e:2x2x1
jax: 0.10.0
libtpu: 0.0.40
codegen_flags: <defaults>
</compile_context>

<pallas_src>
import jax
import jax.numpy as jnp
from jax.experimental import pallas as pl
from jax.experimental.pallas import tpu as pltpu


_H2_CHUNK = 512  # columns of w1 / rows of w2 processed per inner step


def _round_up(x, m):
    return (x + m - 1) // m * m


def _head_kernel(x_ref, w1_ref, b1_ref, w2_ref, b2_ref, w3_ref, b3_ref, o_ref):
    """One batch tile per grid step; weights stay VMEM-resident (constant index_maps)."""
    x = x_ref[...].astype(jnp.bfloat16)           # accepts f32 or bf16 input tiles
    tb = x.shape[0]
    H2p = w1_ref.shape[1]
    Hp_out = w2_ref.shape[1]

    # linear (H -> 2H) fused with dense (2H -> H), chunked along the 2H axis so
    # the f32 h1 intermediate never exceeds [tile_b, _H2_CHUNK].
    # Dropout after `linear` = identity in eval mode.
    acc = jnp.zeros((tb, Hp_out), jnp.float32)
    chunk = min(_H2_CHUNK, H2p)
    for c0 in range(0, H2p, chunk):               # static Python loop (unrolled)
        c1 = min(c0 + chunk, H2p)
        h1_c = jnp.dot(x, w1_ref[:, c0:c1],
                       preferred_element_type=jnp.float32) + b1_ref[:, c0:c1]
        acc = acc + jnp.dot(h1_c.astype(jnp.bfloat16), w2_ref[c0:c1, :],
                            preferred_element_type=jnp.float32)
    h2 = jnp.tanh(acc + b2_ref[...])              # f32 tanh (EUP); dropout = identity

    # out_proj (H -> 2, lane-padded to 128; wrapper slices off the padding).
    logits = jnp.dot(h2.astype(jnp.bfloat16), w3_ref[...],
                     preferred_element_type=jnp.float32) + b3_ref[...]
    o_ref[...] = logits.astype(o_ref.dtype)


def prepare_head_params(w1, b1, w2, b2, w3, b3):
    """Pad/cast the parameters ONCE (call outside the hot path and reuse).

    Weights are [in, out], cast to bf16 and zero-padded to lane-dense multiples
    of 128; biases become f32 rows (1, padded_out). Returns (params, dims)."""
    H, H2 = w1.shape
    n_out = w3.shape[1]
    assert w2.shape == (H2, H) and w3.shape == (H, n_out)
    assert b1.shape == (H2,) and b2.shape == (H,) and b3.shape == (n_out,)

    Hp = _round_up(H, 128)
    H2p = _round_up(H2, 128)
    Np = _round_up(max(n_out, 128), 128)
    bf16, f32 = jnp.bfloat16, jnp.float32

    def pad2(a, rows, cols, dt):
        if a.shape == (rows, cols) and a.dtype == dt:
            return a
        return jnp.zeros((rows, cols), dt).at[:a.shape[0], :a.shape[1]].set(a.astype(dt))

    w1p = pad2(w1, Hp, H2p, bf16)
    w2p = pad2(w2, H2p, Hp, bf16)
    w3p = pad2(w3, Hp, Np, bf16)
    b1p = pad2(b1.reshape(1, -1), 1, H2p, f32)
    b2p = pad2(b2.reshape(1, -1), 1, Hp, f32)
    b3p = pad2(b3.reshape(1, -1), 1, Np, f32)
    return (w1p, b1p, w2p, b2p, w3p, b3p), (H, H2, n_out)


def _default_tile_b(B):
    # Multiple of 16 (bf16 sublane packing); >= 2 grid steps when B > 16 so the
    # "parallel" batch axis shards across v7x's two TensorCores; capped at 512
    # to amortize per-step overhead without blowing VMEM.
    if B <= 16:
        return 16
    return min(512, max(16, _round_up(-(-B // 2), 16)))


def _vmem_cap_bytes():
    try:
        kind = jax.devices()[0].device_kind.lower()
    except Exception:
        kind = ""
    if "v5" in kind or "v6" in kind:
        return 96 * 1024 * 1024       # 128 MiB physical VMEM
    return 48 * 1024 * 1024           # v7x-safe default (64 MiB physical)


def roberta_classification_head(x, params, dims, *, tile_b=None):
    """x: [B, H] (f32 or bf16); params/dims from prepare_head_params().
    Returns f32 [B, n_out] logits."""
    w1p, b1p, w2p, b2p, w3p, b3p = params
    H, H2, n_out = dims
    B = x.shape[0]
    assert x.shape[1] == H
    Hp, H2p = w1p.shape
    Np = w3p.shape[1]

    if tile_b is None:
        tile_b = _default_tile_b(B)
    Bp = _round_up(B, tile_b)

    # Only materialize a padded copy of x when actually needed (H % 128 != 0 or
    # ragged batch); otherwise pass it straight through and cast in-kernel.
    if H == Hp and B == Bp:
        xp = x
    else:
        xp = jnp.zeros((Bp, Hp), jnp.bfloat16).at[:B, :H].set(x.astype(jnp.bfloat16))

    grid = (Bp // tile_b,)

    flops = 2 * Bp * (Hp * H2p + H2p * Hp + Hp * Np)
    bytes_accessed = (
        xp.size * xp.dtype.itemsize
        + (w1p.size + w2p.size + w3p.size) * 2
        + (b1p.size + b2p.size + b3p.size) * 4
        + Bp * Np * 2
    )

    chunk = min(_H2_CHUNK, H2p)
    vmem_est = int(
        2 * tile_b * Hp * xp.dtype.itemsize          # double-buffered x tiles
        + 2 * tile_b * Np * 2                        # double-buffered bf16 out tiles
        + 2 * 2 * (Hp * H2p + H2p * Hp + Hp * Np)    # bf16 weights (resident, 2 bufs)
        + 2 * 4 * (H2p + Hp + Np)                    # f32 biases
        + 4 * tile_b * (chunk + Hp + Np)             # live f32 intermediates
        + 4 * 1024 * 1024                            # headroom
    )
    vmem_limit = min(max(vmem_est, 16 * 1024 * 1024), _vmem_cap_bytes())

    out_padded = pl.pallas_call(
        _head_kernel,
        out_shape=jax.ShapeDtypeStruct((Bp, Np), jnp.bfloat16),
        grid_spec=pltpu.PrefetchScalarGridSpec(
            num_scalar_prefetch=0,
            grid=grid,
            in_specs=[
                pl.BlockSpec((tile_b, Hp), lambda i: (i, 0)),   # x tile (streamed)
                pl.BlockSpec((Hp, H2p), lambda i: (0, 0)),      # w1 (VMEM-resident)
                pl.BlockSpec((1, H2p), lambda i: (0, 0)),       # b1
                pl.BlockSpec((H2p, Hp), lambda i: (0, 0)),      # w2 (VMEM-resident)
                pl.BlockSpec((1, Hp), lambda i: (0, 0)),        # b2
                pl.BlockSpec((Hp, Np), lambda i: (0, 0)),       # w3 (VMEM-resident)
                pl.BlockSpec((1, Np), lambda i: (0, 0)),        # b3
            ],
            out_specs=pl.BlockSpec((tile_b, Np), lambda i: (i, 0)),
        ),
        compiler_params=pltpu.CompilerParams(
            dimension_semantics=("parallel",),
            vmem_limit_bytes=vmem_limit,
        ),
        cost_estimate=pl.CostEstimate(
            flops=flops,
            transcendentals=Bp * Hp,
            bytes_accessed=bytes_accessed,
        ),
    )(xp, w1p, b1p, w2p, b2p, w3p, b3p)

    # Strip batch/lane padding (padded rows hold tanh(b2)-derived garbage) -> f32.
    return out_padded[:B, :n_out].astype(jnp.float32)


def _reference(x, w1, b1, w2, b2, w3, b3):
    h1 = x @ w1 + b1.reshape(1, -1)
    h2 = jnp.tanh(h1 @ w2 + b2.reshape(1, -1))
    return h2 @ w3 + b3.reshape(1, -1)


if __name__ == "__main__":
    key = jax.random.PRNGKey(0)
    B, H = 8, 32  # batch, config.hidden_size

    keys = jax.random.split(key, 7)
    x = jax.random.normal(keys[0], (B, H), jnp.float32)

    # Parameters match the nn.Module shapes, stored [in, out]:
    #   linear:   [H, 2H], [2H]; dense: [2H, H], [H]; out_proj: [H, 2], [2]
    w1 = jax.random.normal(keys[1], (H, 2 * H), jnp.float32) * 0.05
    b1 = jax.random.normal(keys[2], (2 * H,), jnp.float32) * 0.05
    w2 = jax.random.normal(keys[3], (2 * H, H), jnp.float32) * 0.05
    b2 = jax.random.normal(keys[4], (H,), jnp.float32) * 0.05
    w3 = jax.random.normal(keys[5], (H, 2), jnp.float32) * 0.05
    b3 = jax.random.normal(keys[6], (2,), jnp.float32) * 0.05

    # Pad/cast the weights exactly once (outside the hot path); reuse `params`.
    params, dims = prepare_head_params(w1, b1, w2, b2, w3, b3)

    out = roberta_classification_head(x, params, dims)
    out = jax.block_until_ready(out)

    ref = _reference(x, w1, b1, w2, b2, w3, b3)
    assert out.shape == (B, 2)
    # bf16 MXU inputs (intermediates re-rounded to bf16) vs f32 reference.
    assert jnp.allclose(out, ref, atol=2e-2, rtol=2e-2), (
        f"max abs err {jnp.max(jnp.abs(out - ref))}"
    )

    print("KERNEL_OK")
</pallas_src>

<mosaic_0001>
module attributes {stable_mosaic.version = 11 : i64} {
  func.func @_head_kernel(%arg0: i32, %arg1: memref<16x128xbf16, #tpu.memory_space<vmem>>, %arg2: memref<128x128xbf16, #tpu.memory_space<vmem>>, %arg3: memref<1x128xf32, #tpu.memory_space<vmem>>, %arg4: memref<128x128xbf16, #tpu.memory_space<vmem>>, %arg5: memref<1x128xf32, #tpu.memory_space<vmem>>, %arg6: memref<128x128xbf16, #tpu.memory_space<vmem>>, %arg7: memref<1x128xf32, #tpu.memory_space<vmem>>, %arg8: memref<16x128xbf16, #tpu.memory_space<vmem>>) attributes {dimension_semantics = [#tpu.dimension_semantics<parallel>], iteration_bounds = array<i64: 1>, scalar_prefetch = 0 : i64, scratch_operands = 0 : i64, tpu.core_type = #tpu.core_type<tc>, window_params = [{transform_indices = @transform_0, window_bounds = array<i64: 16, 128>}, {pipeline_mode = #tpu.pipeline_mode<synchronous>, transform_indices = @transform_1, window_bounds = array<i64: 128, 128>}, {pipeline_mode = #tpu.pipeline_mode<synchronous>, transform_indices = @transform_2, window_bounds = array<i64: 1, 128>}, {pipeline_mode = #tpu.pipeline_mode<synchronous>, transform_indices = @transform_3, window_bounds = array<i64: 128, 128>}, {pipeline_mode = #tpu.pipeline_mode<synchronous>, transform_indices = @transform_4, window_bounds = array<i64: 1, 128>}, {pipeline_mode = #tpu.pipeline_mode<synchronous>, transform_indices = @transform_5, window_bounds = array<i64: 128, 128>}, {pipeline_mode = #tpu.pipeline_mode<synchronous>, transform_indices = @transform_6, window_bounds = array<i64: 1, 128>}, {transform_indices = @transform_7, window_bounds = array<i64: 16, 128>}]} {
    %c0 = arith.constant 0 : index
    %c0_0 = arith.constant 0 : index
    %0 = vector.load %arg1[%c0, %c0_0] : memref<16x128xbf16, #tpu.memory_space<vmem>>, vector<16x128xbf16>
    %cst = arith.constant 0.000000e+00 : f32
    %1 = vector.broadcast %cst : f32 to vector<16x128xf32>
    %c0_1 = arith.constant 0 : index
    %c0_2 = arith.constant 0 : index
    %2 = vector.load %arg2[%c0_1, %c0_2] : memref<128x128xbf16, #tpu.memory_space<vmem>>, vector<128x128xbf16>
    %cst_3 = arith.constant dense<0.000000e+00> : vector<16x128xf32>
    %3 = tpu.matmul %0, %2, %cst_3 {dimension_numbers = #tpu.dot_dimension_numbers<[1], [0], [0], [1], [0, 0, 1, 1], [], []>} : vector<16x128xbf16>, vector<128x128xbf16>, vector<16x128xf32> -> vector<16x128xf32>
    %c0_4 = arith.constant 0 : index
    %c0_5 = arith.constant 0 : index
    %4 = vector.load %arg3[%c0_4, %c0_5] : memref<1x128xf32, #tpu.memory_space<vmem>>, vector<1x128xf32>
    %5 = vector.broadcast %4 : vector<1x128xf32> to vector<16x128xf32>
    %6 = arith.addf %3, %5 : vector<16x128xf32>
    %7 = arith.truncf %6 : vector<16x128xf32> to vector<16x128xbf16>
    %c0_6 = arith.constant 0 : index
    %c0_7 = arith.constant 0 : index
    %8 = vector.load %arg4[%c0_6, %c0_7] : memref<128x128xbf16, #tpu.memory_space<vmem>>, vector<128x128xbf16>
    %cst_8 = arith.constant dense<0.000000e+00> : vector<16x128xf32>
    %9 = tpu.matmul %7, %8, %cst_8 {dimension_numbers = #tpu.dot_dimension_numbers<[1], [0], [0], [1], [0, 0, 1, 1], [], []>} : vector<16x128xbf16>, vector<128x128xbf16>, vector<16x128xf32> -> vector<16x128xf32>
    %10 = arith.addf %1, %9 : vector<16x128xf32>
    %c0_9 = arith.constant 0 : index
    %c0_10 = arith.constant 0 : index
    %11 = vector.load %arg5[%c0_9, %c0_10] : memref<1x128xf32, #tpu.memory_space<vmem>>, vector<1x128xf32>
    %12 = vector.broadcast %11 : vector<1x128xf32> to vector<16x128xf32>
    %13 = arith.addf %10, %12 : vector<16x128xf32>
    %14 = math.tanh %13 : vector<16x128xf32>
    %15 = arith.truncf %14 : vector<16x128xf32> to vector<16x128xbf16>
    %c0_11 = arith.constant 0 : index
    %c0_12 = arith.constant 0 : index
    %16 = vector.load %arg6[%c0_11, %c0_12] : memref<128x128xbf16, #tpu.memory_space<vmem>>, vector<128x128xbf16>
    %cst_13 = arith.constant dense<0.000000e+00> : vector<16x128xf32>
    %17 = tpu.matmul %15, %16, %cst_13 {dimension_numbers = #tpu.dot_dimension_numbers<[1], [0], [0], [1], [0, 0, 1, 1], [], []>} : vector<16x128xbf16>, vector<128x128xbf16>, vector<16x128xf32> -> vector<16x128xf32>
    %c0_14 = arith.constant 0 : index
    %c0_15 = arith.constant 0 : index
    %18 = vector.load %arg7[%c0_14, %c0_15] : memref<1x128xf32, #tpu.memory_space<vmem>>, vector<1x128xf32>
    %19 = vector.broadcast %18 : vector<1x128xf32> to vector<16x128xf32>
    %20 = arith.addf %17, %19 : vector<16x128xf32>
    %21 = arith.truncf %20 : vector<16x128xf32> to vector<16x128xbf16>
    %c0_16 = arith.constant 0 : index
    %c0_17 = arith.constant 0 : index
    %22 = vector.load %arg8[%c0_16, %c0_17] : memref<16x128xbf16, #tpu.memory_space<vmem>>, vector<16x128xbf16>
    tpu.vector_store %arg8[%c0_16, %c0_17], %21 {strides = array<i32>} : memref<16x128xbf16, #tpu.memory_space<vmem>>, vector<16x128xbf16>,
    return
  }
  func.func @transform_0(%arg0: i32) -> (i32, i32) {
    %c0_i32 = arith.constant 0 : i32
    %c0_i32_0 = arith.constant 0 : i32
    return %arg0, %c0_i32 : i32, i32
  }
  func.func @transform_1(%arg0: i32) -> (i32, i32) {
    %c0_i32 = arith.constant 0 : i32
    %c0_i32_0 = arith.constant 0 : i32
    %c0_i32_1 = arith.constant 0 : i32
    return %c0_i32, %c0_i32_0 : i32, i32
  }
  func.func @transform_2(%arg0: i32) -> (i32, i32) {
    %c0_i32 = arith.constant 0 : i32
    %c0_i32_0 = arith.constant 0 : i32
    %c0_i32_1 = arith.constant 0 : i32
    return %c0_i32, %c0_i32_0 : i32, i32
  }
  func.func @transform_3(%arg0: i32) -> (i32, i32) {
    %c0_i32 = arith.constant 0 : i32
    %c0_i32_0 = arith.constant 0 : i32
    %c0_i32_1 = arith.constant 0 : i32
    return %c0_i32, %c0_i32_0 : i32, i32
  }
  func.func @transform_4(%arg0: i32) -> (i32, i32) {
    %c0_i32 = arith.constant 0 : i32
    %c0_i32_0 = arith.constant 0 : i32
    %c0_i32_1 = arith.constant 0 : i32
    return %c0_i32, %c0_i32_0 : i32, i32
  }
  func.func @transform_5(%arg0: i32) -> (i32, i32) {
    %c0_i32 = arith.constant 0 : i32
    %c0_i32_0 = arith.constant 0 : i32
    %c0_i32_1 = arith.constant 0 : i32
    return %c0_i32, %c0_i32_0 : i32, i32
  }
  func.func @transform_6(%arg0: i32) -> (i32, i32) {
    %c0_i32 = arith.constant 0 : i32
    %c0_i32_0 = arith.constant 0 : i32
    %c0_i32_1 = arith.constant 0 : i32
    return %c0_i32, %c0_i32_0 : i32, i32
  }
  func.func @transform_7(%arg0: i32) -> (i32, i32) {
    %c0_i32 = arith.constant 0 : i32
    %c0_i32_0 = arith.constant 0 : i32
    return %arg0, %c0_i32 : i32, i32
  }
}

</mosaic_0001>

<llo_original>
// kernel: tpu_custom_call.1
$region0: #{tpu_custom_call.1}
  #allocation0 [shape = 'u32[]', space=smem, size = 0x4, offset = 0x4, fixed_abs, tag = 'smem constant byte address 0x4 - core index']
  #allocation1 [shape = 'u32[144,128]{1,0:T(1,128)}', space=vmem, size = 0x12000, scoped, tag = 'internal scratch']
  %s0 = inlined_call_operand.hbm [shape: bf16[16,128], index: 0, kind: input, shape index: {}]
  %s1 = inlined_call_operand.hbm [shape: bf16[128,128], index: 1, kind: input, shape index: {}]
  %s2 = inlined_call_operand.vmem [shape: f32[1,128], index: 2, kind: input, shape index: {}]
  %s3 = inlined_call_operand.hbm [shape: bf16[128,128], index: 3, kind: input, shape index: {}]
  %s4 = inlined_call_operand.vmem [shape: f32[1,128], index: 4, kind: input, shape index: {}]
  %s5 = inlined_call_operand.hbm [shape: bf16[128,128], index: 5, kind: input, shape index: {}]
  %s6 = inlined_call_operand.vmem [shape: f32[1,128], index: 6, kind: input, shape index: {}]
  %s7 = inlined_call_operand.hbm [shape: bf16[16,128], index: 7, kind: output, shape index: {}]
  %s8 = sld [smem:[#allocation0]]
  $region54: #{tpu_custom_call.1} parent=0
    _
  %s10 = ssub.s32 1, %s8
  %s11 = scalar_select 0, %s10, %s8
  $region1: #{tpu_custom_call.1} parent=0
    #allocation2 [shape = 'u8[4096]{0}', space=vmem, size = 0x1000, scoped, tag = 'input window, operand 0, single buffered']
    #allocation3 [shape = 's32[1]{0}', space=sflag, size = 0x4, scoped, tag = 'scoped memory for tpu_custom_call.1']
    #allocation4 [shape = 's32[1]{0}', space=sflag, size = 0x4, scoped, tag = 'scoped memory for tpu_custom_call.1']
    #allocation5 [shape = 'u8[32768]{0}', space=vmem, size = 0x8000, scoped, tag = 'input window, operand 1, single buffered']
    #allocation6 [shape = 's32[1]{0}', space=sflag, size = 0x4, scoped, tag = 'scoped memory for tpu_custom_call.1']
    #allocation7 [shape = 'u8[32768]{0}', space=vmem, size = 0x8000, scoped, tag = 'input window, operand 3, single buffered']
    #allocation8 [shape = 'u8[32768]{0}', space=vmem, size = 0x8000, scoped, tag = 'input window, operand 5, single buffered']
    #allocation9 [shape = 's32[1]{0}', space=sflag, size = 0x4, scoped, tag = 'scoped memory for tpu_custom_call.1']
    #allocation10 [shape = 'u8[4096]{0}', space=vmem, size = 0x1000, scoped, tag = 'output window, operand 0, single buffered']
    %12 = vsyncpa [#allocation3], 0
    %13 = vsyncpa [#allocation6], 0
    %14 = vsyncpa [#allocation9], 0
    %15 = vsyncpa [#allocation4], 0
    // Predicated region
    $region2: #{tpu_custom_call.1} parent=1 // pred_check
      _
    $region3: #{tpu_custom_call.1} parent=1 // pred_check_branch
      %17 = sbr.rel (0) target = $region5
    $region4: #{tpu_custom_call.1} parent=1 // pred_region
      %s19 = ssub.s32 128, 128
      %20 = vsyncadd [#allocation3], %s19
      %s21 = sshll.u32 [#allocation2], 4
      %s22 = int_to_ptr.vmem [resolvable:$true] %s21
      %27 = dma.hbm_to_vmem [thread:$0]  %s0, 128, %s22, [#allocation3], 64, 64, 4
    $region5: #{tpu_custom_call.1} parent=1 // pred_fallthru
      _
    // Predicated region
    $region6: #{tpu_custom_call.1} parent=1 // pred_check
      _
    $region7: #{tpu_custom_call.1} parent=1 // pred_check_branch
      %29 = sbr.rel (0) target = $region9
    $region8: #{tpu_custom_call.1} parent=1 // pred_region
      %s31 = ssub.s32 1024, 1024
      %32 = vsyncadd [#allocation6], %s31
      %s33 = sshll.u32 [#allocation5], 4
      %s34 = int_to_ptr.vmem [resolvable:$true] %s33
      %39 = dma.hbm_to_vmem [thread:$0]  %s1, 1024, %s34, [#allocation6], 64, 64, 4
    $region9: #{tpu_custom_call.1} parent=1 // pred_fallthru
      _
    // Predicated region
    $region10: #{tpu_custom_call.1} parent=1 // pred_check
      _
    $region11: #{tpu_custom_call.1} parent=1 // pred_check_branch
      %41 = sbr.rel (0) target = $region13
    $region12: #{tpu_custom_call.1} parent=1 // pred_region
      _
    $region13: #{tpu_custom_call.1} parent=1 // pred_fallthru
      _
    // Predicated region
    $region14: #{tpu_custom_call.1} parent=1 // pred_check
      _
    $region15: #{tpu_custom_call.1} parent=1 // pred_check_branch
      %43 = sbr.rel (0) target = $region17
    $region16: #{tpu_custom_call.1} parent=1 // pred_region
      %s45 = ssub.s32 1024, 1024
      %46 = vsyncadd [#allocation6], %s45
      %s47 = sshll.u32 [#allocation7], 4
      %s48 = int_to_ptr.vmem [resolvable:$true] %s47
      %53 = dma.hbm_to_vmem [thread:$0]  %s3, 1024, %s48, [#allocation6], 64, 64, 4
    $region17: #{tpu_custom_call.1} parent=1 // pred_fallthru
      _
    // Predicated region
    $region18: #{tpu_custom_call.1} parent=1 // pred_check
      _
    $region19: #{tpu_custom_call.1} parent=1 // pred_check_branch
      %55 = sbr.rel (0) target = $region21
    $region20: #{tpu_custom_call.1} parent=1 // pred_region
      _
    $region21: #{tpu_custom_call.1} parent=1 // pred_fallthru
      _
    // Predicated region
    $region22: #{tpu_custom_call.1} parent=1 // pred_check
      _
    $region23: #{tpu_custom_call.1} parent=1 // pred_check_branch
      %57 = sbr.rel (0) target = $region25
    $region24: #{tpu_custom_call.1} parent=1 // pred_region
      %s59 = ssub.s32 1024, 1024
      %60 = vsyncadd [#allocation9], %s59
      %s61 = sshll.u32 [#allocation8], 4
      %s62 = int_to_ptr.vmem [resolvable:$true] %s61
      %67 = dma.hbm_to_vmem [thread:$0]  %s5, 1024, %s62, [#allocation9], 64, 64, 4
    $region25: #{tpu_custom_call.1} parent=1 // pred_fallthru
      _
    // Predicated region
    $region26: #{tpu_custom_call.1} parent=1 // pred_check
      _
    $region27: #{tpu_custom_call.1} parent=1 // pred_check_branch
      %69 = sbr.rel (0) target = $region29
    $region28: #{tpu_custom_call.1} parent=1 // pred_region
      _
    $region29: #{tpu_custom_call.1} parent=1 // pred_fallthru
      _
    // Predicated region
    $region30: #{tpu_custom_call.1} parent=1 // pred_check
      _
    $region31: #{tpu_custom_call.1} parent=1 // pred_check_branch
      %71 = sbr.rel (0) target = $region33
    $region32: #{tpu_custom_call.1} parent=1 // pred_region
      %72 = dma.done [#allocation3], 128
    $region33: #{tpu_custom_call.1} parent=1 // pred_fallthru
      _
    // Predicated region
    $region34: #{tpu_custom_call.1} parent=1 // pred_check
      _
    $region35: #{tpu_custom_call.1} parent=1 // pred_check_branch
      %74 = sbr.rel (0) target = $region37
    $region36: #{tpu_custom_call.1} parent=1 // pred_region
      %75 = dma.done [#allocation6], 1024
    $region37: #{tpu_custom_call.1} parent=1 // pred_fallthru
      _
    // Predicated region
    $region38: #{tpu_custom_call.1} parent=1 // pred_check
      _
    $region39: #{tpu_custom_call.1} parent=1 // pred_check_branch
      %77 = sbr.rel (0) target = $region41
    $region40: #{tpu_custom_call.1} parent=1 // pred_region
      %78 = dma.done [#allocation6], 1024
    $region41: #{tpu_custom_call.1} parent=1 // pred_fallthru
      _
    // Predicated region
    $region42: #{tpu_custom_call.1} parent=1 // pred_check
      _
    $region43: #{tpu_custom_call.1} parent=1 // pred_check_branch
      %80 = sbr.rel (0) target = $region45
    $region44: #{tpu_custom_call.1} parent=1 // pred_region
      %81 = dma.done [#allocation9], 1024
    $region45: #{tpu_custom_call.1} parent=1 // pred_fallthru
      _
    %v83 = vld [vmem:[#allocation2] sm:$0xf]
    %v84 = vld [vmem:[#allocation2 + $0x4] sm:$0xf]
    %v85 = vld [vmem:[#allocation5] sm:$0xf]
    %v86 = vld [vmem:[#allocation5 + $0x4] sm:$0xf]
    %v87 = vld [vmem:[#allocation5 + $0x8] sm:$0xf]
    %v88 = vld [vmem:[#allocation5 + $0xc] sm:$0xf]
    %v89 = vld [vmem:[#allocation5 + $0x10] sm:$0xf]
    %v90 = vld [vmem:[#allocation5 + $0x14] sm:$0xf]
    %v91 = vld [vmem:[#allocation5 + $0x18] sm:$0xf]
    %v92 = vld [vmem:[#allocation5 + $0x1c] sm:$0xf]
    %v93 = vld [vmem:[#allocation5 + $0x20] sm:$0xf]
    %v94 = vld [vmem:[#allocation5 + $0x24] sm:$0xf]
    %v95 = vld [vmem:[#allocation5 + $0x28] sm:$0xf]
    %v96 = vld [vmem:[#allocation5 + $0x2c] sm:$0xf]
    %v97 = vld [vmem:[#allocation5 + $0x30] sm:$0xf]
    %v98 = vld [vmem:[#allocation5 + $0x34] sm:$0xf]
    %v99 = vld [vmem:[#allocation5 + $0x38] sm:$0xf]
    %v100 = vld [vmem:[#allocation5 + $0x3c] sm:$0xf]
    %v101 = vld [vmem:[%s2] sm:$0x1]
    %v103 = vlaneseq
    %v104 = vshrl.u32 %v103, 7
    %v105 = vsub.s32 0, %v104
    %v106 = vrot.slane %v101, %v105
    %v110 = vunpack.c.l.b16 %v83
    %v111 = vunpack.c.l.b16 %v84
    %v112 = vpack.c.b16 %v111, %v110
    %v130 = vunpack.c.l.b16 %v85
    %v131 = vunpack.c.l.b16 %v86
    %v132 = vunpack.c.l.b16 %v87
    %v133 = vunpack.c.l.b16 %v88
    %v134 = vunpack.c.l.b16 %v89
    %v135 = vunpack.c.l.b16 %v90
    %v136 = vunpack.c.l.b16 %v91
    %v137 = vunpack.c.l.b16 %v92
    %v138 = vunpack.c.l.b16 %v93
    %v139 = vunpack.c.l.b16 %v94
    %v140 = vunpack.c.l.b16 %v95
    %v141 = vunpack.c.l.b16 %v96
    %v142 = vunpack.c.l.b16 %v97
    %v143 = vunpack.c.l.b16 %v98
    %v144 = vunpack.c.l.b16 %v99
    %v145 = vunpack.c.l.b16 %v100
    %v146 = vpack.c.b16 %v131, %v130
    %v147 = vpack.c.b16 %v133, %v132
    %v148 = vpack.c.b16 %v135, %v134
    %v149 = vpack.c.b16 %v137, %v136
    %v150 = vpack.c.b16 %v139, %v138
    %v151 = vpack.c.b16 %v141, %v140
    %v152 = vpack.c.b16 %v143, %v142
    %v153 = vpack.c.b16 %v145, %v144
    %162 = vmatprep.subr.bf16.mxu0 0
    %163 = vmatpush1.bf16.msra.mxu0 %v153
    %164 = vmatprep.subr.bf16.mxu0 0
    %165 = vmatpush1.bf16.msra.mxu0 %v152
    %166 = vmatprep.subr.bf16.mxu0 0
    %167 = vmatpush1.bf16.msra.mxu0 %v151
    %168 = vmatprep.subr.bf16.mxu0 0
    %169 = vmatpush1.bf16.msra.mxu0 %v150
    %170 = vmatprep.subr.bf16.mxu0 0
    %171 = vmatpush1.bf16.msra.mxu0 %v149
    %172 = vmatprep.subr.bf16.mxu0 0
    %173 = vmatpush1.bf16.msra.mxu0 %v148
    %174 = vmatprep.subr.bf16.mxu0 0
    %175 = vmatpush1.bf16.msra.mxu0 %v147
    %176 = vmatprep.subr.bf16.mxu0 0
    %177 = vmatpush1.bf16.msra.mxu0 %v146
    %178 = vmatprep.subr.bf16.mxu0 0
    %179 = vmatpush2.bf16.msra.mxu0 0
    %180 = vmatprep.subr.bf16.mxu0 0
    %181 = vmatpush2.bf16.msra.mxu0 0
    %182 = vmatprep.subr.bf16.mxu0 0
    %183 = vmatpush2.bf16.msra.mxu0 0
    %184 = vmatprep.subr.bf16.mxu0 0
    %185 = vmatpush2.bf16.msra.mxu0 0
    %186 = vmatprep.subr.bf16.mxu0 0
    %187 = vmatpush2.bf16.msra.mxu0 0
    %188 = vmatprep.subr.bf16.mxu0 0
    %189 = vmatpush2.bf16.msra.mxu0 0
    %190 = vmatprep.subr.bf16.mxu0 0
    %191 = vmatpush2.bf16.msra.mxu0 0
    %192 = vmatprep.subr.bf16.mxu0 0
    %193 = vmatpush2.bf16.msra.mxu0 0
    %194 = vmatprep.mubr.bf16.mxu0 0
    %195 = vmatmul.mubr.bf16.gmra.mxu0 %v112
    %v196 = vpop.f32.mrf.mxu0
    %v197 = vadd.f32 %v106, %v196
    %v198 = vpop.f32.mrf.mxu0
    %v199 = vpop.f32.mrf.mxu0
    %v200 = vadd.f32 %v106, %v199
    %v201 = vpop.f32.mrf.mxu0
    %202 = vdwg.mxu0
    %v203 = vpack.c.bf16 %v200, %v197
    %v204 = vld [vmem:[#allocation7] sm:$0xf]
    %v205 = vld [vmem:[#allocation7 + $0x4] sm:$0xf]
    %v206 = vld [vmem:[#allocation7 + $0x8] sm:$0xf]
    %v207 = vld [vmem:[#allocation7 + $0xc] sm:$0xf]
    %v208 = vld [vmem:[#allocation7 + $0x10] sm:$0xf]
    %v209 = vld [vmem:[#allocation7 + $0x14] sm:$0xf]
    %v210 = vld [vmem:[#allocation7 + $0x18] sm:$0xf]
    %v211 = vld [vmem:[#allocation7 + $0x1c] sm:$0xf]
    %v212 = vld [vmem:[#allocation7 + $0x20] sm:$0xf]
    %v213 = vld [vmem:[#allocation7 + $0x24] sm:$0xf]
    %v214 = vld [vmem:[#allocation7 + $0x28] sm:$0xf]
    %v215 = vld [vmem:[#allocation7 + $0x2c] sm:$0xf]
    %v216 = vld [vmem:[#allocation7 + $0x30] sm:$0xf]
    %v217 = vld [vmem:[#allocation7 + $0x34] sm:$0xf]
    %v218 = vld [vmem:[#allocation7 + $0x38] sm:$0xf]
    %v219 = vld [vmem:[#allocation7 + $0x3c] sm:$0xf]
    %v220 = vld [vmem:[%s4] sm:$0x1]
    %v222 = vlaneseq
    %v223 = vshrl.u32 %v222, 7
    %v224 = vsub.s32 0, %v223
    %v225 = vrot.slane %v220, %v224
    %v243 = vunpack.c.l.b16 %v204
    %v244 = vunpack.c.l.b16 %v205
    %v245 = vunpack.c.l.b16 %v206
    %v246 = vunpack.c.l.b16 %v207
    %v247 = vunpack.c.l.b16 %v208
    %v248 = vunpack.c.l.b16 %v209
    %v249 = vunpack.c.l.b16 %v210
    %v250 = vunpack.c.l.b16 %v211
    %v251 = vunpack.c.l.b16 %v212
    %v252 = vunpack.c.l.b16 %v213
    %v253 = vunpack.c.l.b16 %v214
    %v254 = vunpack.c.l.b16 %v215
    %v255 = vunpack.c.l.b16 %v216
    %v256 = vunpack.c.l.b16 %v217
    %v257 = vunpack.c.l.b16 %v218
    %v258 = vunpack.c.l.b16 %v219
    %v259 = vpack.c.b16 %v244, %v243
    %v260 = vpack.c.b16 %v246, %v245
    %v261 = vpack.c.b16 %v248, %v247
    %v262 = vpack.c.b16 %v250, %v249
    %v263 = vpack.c.b16 %v252, %v251
    %v264 = vpack.c.b16 %v254, %v253
    %v265 = vpack.c.b16 %v256, %v255
    %v266 = vpack.c.b16 %v258, %v257
    %275 = vmatprep.subr.bf16.mxu0 0
    %276 = vmatpush1.bf16.msra.mxu0 %v266
    %277 = vmatprep.subr.bf16.mxu0 0
    %278 = vmatpush1.bf16.msra.mxu0 %v265
    %279 = vmatprep.subr.bf16.mxu0 0
    %280 = vmatpush1.bf16.msra.mxu0 %v264
    %281 = vmatprep.subr.bf16.mxu0 0
    %282 = vmatpush1.bf16.msra.mxu0 %v263
    %283 = vmatprep.subr.bf16.mxu0 0
    %284 = vmatpush1.bf16.msra.mxu0 %v262
    %285 = vmatprep.subr.bf16.mxu0 0
    %286 = vmatpush1.bf16.msra.mxu0 %v261
    %287 = vmatprep.subr.bf16.mxu0 0
    %288 = vmatpush1.bf16.msra.mxu0 %v260
    %289 = vmatprep.subr.bf16.mxu0 0
    %290 = vmatpush1.bf16.msra.mxu0 %v259
    %291 = vmatprep.subr.bf16.mxu0 0
    %292 = vmatpush2.bf16.msra.mxu0 0
    %293 = vmatprep.subr.bf16.mxu0 0
    %294 = vmatpush2.bf16.msra.mxu0 0
    %295 = vmatprep.subr.bf16.mxu0 0
    %296 = vmatpush2.bf16.msra.mxu0 0
    %297 = vmatprep.subr.bf16.mxu0 0
    %298 = vmatpush2.bf16.msra.mxu0 0
    %299 = vmatprep.subr.bf16.mxu0 0
    %300 = vmatpush2.bf16.msra.mxu0 0
    %301 = vmatprep.subr.bf16.mxu0 0
    %302 = vmatpush2.bf16.msra.mxu0 0
    %303 = vmatprep.subr.bf16.mxu0 0
    %304 = vmatpush2.bf16.msra.mxu0 0
    %305 = vmatprep.subr.bf16.mxu0 0
    %306 = vmatpush2.bf16.msra.mxu0 0
    %307 = vmatprep.mubr.bf16.mxu0 0
    %308 = vmatmul.mubr.bf16.gmra.mxu0 %v203
    %v309 = vpop.f32.mrf.mxu0
    %v310 = vadd.f32 %v225, %v309
    %v311 = vpop.f32.mrf.mxu0
    %v312 = vpop.f32.mrf.mxu0
    %v313 = vadd.f32 %v225, %v312
    %v314 = vpop.f32.mrf.mxu0
    %315 = vdwg.mxu0
    %v316 = vtanh.pop %v310
    %v317 = vtanh.pop %v313
    %v318 = vpack.c.bf16 %v317, %v316
    %v319 = vld [vmem:[#allocation8] sm:$0xf]
    %v320 = vld [vmem:[#allocation8 + $0x4] sm:$0xf]
    %v321 = vld [vmem:[#allocation8 + $0x8] sm:$0xf]
    %v322 = vld [vmem:[#allocation8 + $0xc] sm:$0xf]
    %v323 = vld [vmem:[#allocation8 + $0x10] sm:$0xf]
    %v324 = vld [vmem:[#allocation8 + $0x14] sm:$0xf]
    %v325 = vld [vmem:[#allocation8 + $0x18] sm:$0xf]
    %v326 = vld [vmem:[#allocation8 + $0x1c] sm:$0xf]
    %v327 = vld [vmem:[#allocation8 + $0x20] sm:$0xf]
    %v328 = vld [vmem:[#allocation8 + $0x24] sm:$0xf]
    %v329 = vld [vmem:[#allocation8 + $0x28] sm:$0xf]
    %v330 = vld [vmem:[#allocation8 + $0x2c] sm:$0xf]
    %v331 = vld [vmem:[#allocation8 + $0x30] sm:$0xf]
    %v332 = vld [vmem:[#allocation8 + $0x34] sm:$0xf]
    %v333 = vld [vmem:[#allocation8 + $0x38] sm:$0xf]
    %v334 = vld [vmem:[#allocation8 + $0x3c] sm:$0xf]
    %v335 = vld [vmem:[%s6] sm:$0x1]
    %v337 = vlaneseq
    %v338 = vshrl.u32 %v337, 7
    %v339 = vsub.s32 0, %v338
    %v340 = vrot.slane %v335, %v339
    %v358 = vunpack.c.l.b16 %v319
    %v359 = vunpack.c.l.b16 %v320
    %v360 = vunpack.c.l.b16 %v321
    %v361 = vunpack.c.l.b16 %v322
    %v362 = vunpack.c.l.b16 %v323
    %v363 = vunpack.c.l.b16 %v324
    %v364 = vunpack.c.l.b16 %v325
    %v365 = vunpack.c.l.b16 %v326
    %v366 = vunpack.c.l.b16 %v327
    %v367 = vunpack.c.l.b16 %v328
    %v368 = vunpack.c.l.b16 %v329
    %v369 = vunpack.c.l.b16 %v330
    %v370 = vunpack.c.l.b16 %v331
    %v371 = vunpack.c.l.b16 %v332
    %v372 = vunpack.c.l.b16 %v333
    %v373 = vunpack.c.l.b16 %v334
    %v374 = vpack.c.b16 %v359, %v358
    %v375 = vpack.c.b16 %v361, %v360
    %v376 = vpack.c.b16 %v363, %v362
    %v377 = vpack.c.b16 %v365, %v364
    %v378 = vpack.c.b16 %v367, %v366
    %v379 = vpack.c.b16 %v369, %v368
    %v380 = vpack.c.b16 %v371, %v370
    %v381 = vpack.c.b16 %v373, %v372
    %390 = vmatprep.subr.bf16.mxu0 0
    %391 = vmatpush1.bf16.msra.mxu0 %v381
    %392 = vmatprep.subr.bf16.mxu0 0
    %393 = vmatpush1.bf16.msra.mxu0 %v380
    %394 = vmatprep.subr.bf16.mxu0 0
    %395 = vmatpush1.bf16.msra.mxu0 %v379
    %396 = vmatprep.subr.bf16.mxu0 0
    %397 = vmatpush1.bf16.msra.mxu0 %v378
    %398 = vmatprep.subr.bf16.mxu0 0
    %399 = vmatpush1.bf16.msra.mxu0 %v377
    %400 = vmatprep.subr.bf16.mxu0 0
    %401 = vmatpush1.bf16.msra.mxu0 %v376
    %402 = vmatprep.subr.bf16.mxu0 0
    %403 = vmatpush1.bf16.msra.mxu0 %v375
    %404 = vmatprep.subr.bf16.mxu0 0
    %405 = vmatpush1.bf16.msra.mxu0 %v374
    %406 = vmatprep.subr.bf16.mxu0 0
    %407 = vmatpush2.bf16.msra.mxu0 0
    %408 = vmatprep.subr.bf16.mxu0 0
    %409 = vmatpush2.bf16.msra.mxu0 0
    %410 = vmatprep.subr.bf16.mxu0 0
    %411 = vmatpush2.bf16.msra.mxu0 0
    %412 = vmatprep.subr.bf16.mxu0 0
    %413 = vmatpush2.bf16.msra.mxu0 0
    %414 = vmatprep.subr.bf16.mxu0 0
    %415 = vmatpush2.bf16.msra.mxu0 0
    %416 = vmatprep.subr.bf16.mxu0 0
    %417 = vmatpush2.bf16.msra.mxu0 0
    %418 = vmatprep.subr.bf16.mxu0 0
    %419 = vmatpush2.bf16.msra.mxu0 0
    %420 = vmatprep.subr.bf16.mxu0 0
    %421 = vmatpush2.bf16.msra.mxu0 0
    %422 = vmatprep.mubr.bf16.mxu0 0
    %423 = vmatmul.mubr.bf16.gmra.mxu0 %v318
    %v424 = vpop.f32.mrf.mxu0
    %v425 = vadd.f32 %v340, %v424
    %v426 = vpop.f32.mrf.mxu0
    %v427 = vpop.f32.mrf.mxu0
    %v428 = vadd.f32 %v340, %v427
    %v429 = vpop.f32.mrf.mxu0
    %430 = vdwg.mxu0
    %v431 = vpack.c.bf16 %v428, %v425
    %v433 = vunpack.c.l.b16 %v431
    %v434 = vunpack.c.h.b16 %v431
    %v435 = vpack.c.b16 %v433, %v433
    %v436 = vpack.c.b16 %v434, %v434
    %439 = vst [vmem:[#allocation10] sm:$0xf] %v435
    %440 = vst [vmem:[#allocation10 + $0x4] sm:$0xf] %v436
    // Predicated region
    $region46: #{tpu_custom_call.1} parent=1 // pred_check
      _
    $region47: #{tpu_custom_call.1} parent=1 // pred_check_branch
      %442 = sbr.rel (0) target = $region49
    $region48: #{tpu_custom_call.1} parent=1 // pred_region
      %s444 = ssub.s32 128, 128
      %445 = vsyncadd [#allocation4], %s444
      %s446 = sshll.u32 [#allocation10], 4
      %s447 = int_to_ptr.vmem [resolvable:$true] %s446
      %452 = dma.vmem_to_hbm [thread:$0]  %s447, 128, %s7, [#allocation4], 64, 64, 4
    $region49: #{tpu_custom_call.1} parent=1 // pred_fallthru
      _
    // Predicated region
    $region50: #{tpu_custom_call.1} parent=1 // pred_check
      _
    $region51: #{tpu_custom_call.1} parent=1 // pred_check_branch
      %454 = sbr.rel (0) target = $region53
    $region52: #{tpu_custom_call.1} parent=1 // pred_region
      %455 = dma.done [#allocation4], 128
    $region53: #{tpu_custom_call.1} parent=1 // pred_fallthru
      _
    %456 = vsyncpa [#allocation3], 1
    %457 = vsyncpa [#allocation6], 1
    %458 = vsyncpa [#allocation9], 1
    %459 = vsyncpa [#allocation4], 1

</llo_original>
